<compile_context>
chip_gen: v6e
topology: v6e:2x2x1
jax: 0.10.0
libtpu: 0.0.40
codegen_flags: <defaults>
</compile_context>

<pallas_src>
import jax
import jax.numpy as jnp
from jax.experimental import pallas as pl
from jax.experimental.pallas import tpu as pltpu


_INNER = 12 * 32  # 384 lanes = 3 * 128 -> unmasked full-width stores


def _copy_kernel(a_ref, o_ref):
    # One (TM, 384) tile per grid step; pure lane-dense copy.
    o_ref[...] = a_ref[...]


def unsafe_view_dynamic_expand(a: jax.Array) -> jax.Array:
    """a: float32[B0, B1, 384] -> float32[B0, B1, 12, 32] (contiguous)."""
    b0, b1, inner = a.shape
    assert inner == _INNER, a.shape
    rows = b0 * b1

    # Metadata-only: collapse the dynamic leading dims into a dense row axis
    # so the kernel sees a lane-dense 2-D slab.
    a2d = a.reshape(rows, inner)

    # Row tile: full extent for small inputs (any row count is legal when the
    # block spans the whole axis), otherwise 1024 rows (multiple of 8,
    # ~1.5 MiB per f32 block -> ~3 MiB double-buffered per operand, well under
    # the scoped-VMEM default on v5e/v6e/v7x).  Ragged last block is handled
    # (masked) by Pallas automatically.
    tm = rows if rows <= 1024 else 1024
    grid = (pl.cdiv(rows, tm),)

    out2d = pl.pallas_call(
        _copy_kernel,
        out_shape=jax.ShapeDtypeStruct((rows, inner), a.dtype),
        grid=grid,
        in_specs=[pl.BlockSpec((tm, inner), lambda i: (i, 0))],
        out_specs=pl.BlockSpec((tm, inner), lambda i: (i, 0)),
        compiler_params=pltpu.CompilerParams(
            dimension_semantics=("parallel",)),  # shards rows across TCs on v7x
    )(a2d)

    # Metadata-only: expand to the aten._unsafe_view target shape.
    return out2d.reshape(b0, b1, 12, 32)


unsafe_view_dynamic_expand_jit = jax.jit(unsafe_view_dynamic_expand)


if __name__ == "__main__":
    key = jax.random.PRNGKey(0)
    # Small shape consistent with the module: [-1, -1, -1] with last dim 384.
    a = jax.random.normal(key, (2, 4, _INNER), dtype=jnp.float32)

    out = unsafe_view_dynamic_expand_jit(a)
    jax.block_until_ready(out)

    # Correctness check against the reference view semantics.
    ref = a.reshape(2, 4, 12, 32)
    assert out.shape == (2, 4, 12, 32), out.shape
    assert out.dtype == jnp.float32, out.dtype
    assert bool(jnp.all(out == ref)), "mismatch vs reference _unsafe_view"

    print("KERNEL_OK")
</pallas_src>

<mosaic_0001>
module attributes {stable_mosaic.version = 11 : i64} {
  func.func @_copy_kernel(%arg0: i32, %arg1: memref<8x384xf32, #tpu.memory_space<vmem>>, %arg2: memref<8x384xf32, #tpu.memory_space<vmem>>) attributes {dimension_semantics = [#tpu.dimension_semantics<parallel>], iteration_bounds = array<i64: 1>, scalar_prefetch = 0 : i64, scratch_operands = 0 : i64, tpu.core_type = #tpu.core_type<tc>, window_params = [{transform_indices = @transform_0, window_bounds = array<i64: 8, 384>}, {transform_indices = @transform_1, window_bounds = array<i64: 8, 384>}]} {
    %c0 = arith.constant 0 : index
    %c0_0 = arith.constant 0 : index
    %0 = vector.load %arg1[%c0, %c0_0] : memref<8x384xf32, #tpu.memory_space<vmem>>, vector<8x384xf32>
    %c0_1 = arith.constant 0 : index
    %c0_2 = arith.constant 0 : index
    %1 = vector.load %arg2[%c0_1, %c0_2] : memref<8x384xf32, #tpu.memory_space<vmem>>, vector<8x384xf32>
    tpu.vector_store %arg2[%c0_1, %c0_2], %0 {strides = array<i32>} : memref<8x384xf32, #tpu.memory_space<vmem>>, vector<8x384xf32>,
    return
  }
  func.func @transform_0(%arg0: i32) -> (i32, i32) {
    %c0_i32 = arith.constant 0 : i32
    %c0_i32_0 = arith.constant 0 : i32
    return %arg0, %c0_i32 : i32, i32
  }
  func.func @transform_1(%arg0: i32) -> (i32, i32) {
    %c0_i32 = arith.constant 0 : i32
    %c0_i32_0 = arith.constant 0 : i32
    return %arg0, %c0_i32 : i32, i32
  }
}

</mosaic_0001>

<llo_original>
// kernel: unsafe_view_dynamic_expand.1
$region0: #{unsafe_view_dynamic_expand.1}
  #allocation0 [shape = 'u32[]', space=smem, size = 0x4, offset = 0x4, fixed_abs, tag = 'smem constant byte address 0x4 - core index']
  #allocation1 [shape = 'u32[144,128]{1,0:T(1,128)}', space=vmem, size = 0x12000, scoped, tag = 'internal scratch']
  %s0 = inlined_call_operand.vmem [shape: f32[8,384], index: 0, kind: input, shape index: {}]
  %s1 = inlined_call_operand.vmem [shape: f32[8,384], index: 1, kind: output, shape index: {}]
  %s2 = sld [smem:[#allocation0]]
  $region14: #{unsafe_view_dynamic_expand.1} parent=0
    _
  %s4 = ssub.s32 1, %s2
  %s5 = scalar_select 0, %s4, %s2
  // Predicated region
  $region2: #{unsafe_view_dynamic_expand.1} parent=0 // pred_check
    _
  $region3: #{unsafe_view_dynamic_expand.1} parent=0 // pred_check_branch
    %7 = sbr.rel (0) target = $region5
  $region4: #{unsafe_view_dynamic_expand.1} parent=0 // pred_region
    _
  $region5: #{unsafe_view_dynamic_expand.1} parent=0 // pred_fallthru
    _
  %v8 = vld [vmem:[%s0] sm:$0xff]
  %v9 = vld [vmem:[%s0 + $0x8] sm:$0xff]
  %v10 = vld [vmem:[%s0 + $0x10] sm:$0xff]
  %11 = vst [vmem:[%s1] sm:$0xff] %v8
  %12 = vst [vmem:[%s1 + $0x8] sm:$0xff] %v9
  %13 = vst [vmem:[%s1 + $0x10] sm:$0xff] %v10
  // Predicated region
  $region6: #{unsafe_view_dynamic_expand.1} parent=0 // pred_check
    _
  $region7: #{unsafe_view_dynamic_expand.1} parent=0 // pred_check_branch
    %15 = sbr.rel (0) target = $region9
  $region8: #{unsafe_view_dynamic_expand.1} parent=0 // pred_region
    _
  $region9: #{unsafe_view_dynamic_expand.1} parent=0 // pred_fallthru
    _
  // Predicated region
  $region10: #{unsafe_view_dynamic_expand.1} parent=0 // pred_check
    _
  $region11: #{unsafe_view_dynamic_expand.1} parent=0 // pred_check_branch
    %17 = sbr.rel (0) target = $region13
  $region12: #{unsafe_view_dynamic_expand.1} parent=0 // pred_region
    _
  $region13: #{unsafe_view_dynamic_expand.1} parent=0 // pred_fallthru
    _

</llo_original>
